<compile_context>
chip_gen: v7x
topology: tpu7x:2x2x1
jax: 0.10.0
libtpu: 0.0.40
codegen_flags: <defaults>
</compile_context>

<pallas_src>
import jax
import jax.numpy as jnp
import numpy as np
from jax import lax
from jax.experimental import pallas as pl
from jax.experimental.pallas import tpu as pltpu

LANE = 128


def _round_up(x, m):
    return (x + m - 1) // m * m


# ----------------------------- Pallas kernel ------------------------------ #

def _gemm_bias_swish_kernel(x_ref, w_ref, b_ref, o_ref):
    """One pixel tile: y = x @ w + b ; out = y * sigmoid(y).

    x: (TILE_M, K) bf16 im2col tile, w: (K, COUT_PAD) bf16 (BN scale folded in),
    b: (1, COUT_PAD) f32 folded bias, o: (TILE_M, COUT_PAD) f32 (lane-dense).
    """
    y = jnp.dot(x_ref[...], w_ref[...], preferred_element_type=jnp.float32)
    y = y + b_ref[...]                      # (1, COUT_PAD) broadcast once per tile
    o_ref[...] = y * jax.nn.sigmoid(y)      # Swish in f32 (v5e has no bf16 VPU/EUP)


def fused_gemm_bias_swish(x, w, b, *, tile_m=512):
    """Tiled, pipelined (M, K) @ (K, COUT_PAD) + bias, then Swish."""
    m, k = x.shape
    k2, n = w.shape
    assert k == k2 and n % LANE == 0 and b.shape == (1, n)

    m_pad = _round_up(m, tile_m)
    if m_pad != m:
        x = jnp.pad(x, ((0, m_pad - m), (0, 0)))
    grid = (m_pad // tile_m,)

    out = pl.pallas_call(
        _gemm_bias_swish_kernel,
        out_shape=jax.ShapeDtypeStruct((m_pad, n), jnp.float32),
        grid_spec=pltpu.PrefetchScalarGridSpec(
            num_scalar_prefetch=0,
            grid=grid,
            in_specs=[
                pl.BlockSpec((tile_m, k), lambda i: (i, 0)),   # pixel tile (pipelined)
                pl.BlockSpec((k, n), lambda i: (0, 0)),        # folded weights (resident)
                pl.BlockSpec((1, n), lambda i: (0, 0)),        # folded bias (resident)
            ],
            out_specs=pl.BlockSpec((tile_m, n), lambda i: (i, 0)),
        ),
        compiler_params=pltpu.CompilerParams(
            dimension_semantics=("parallel",),                 # megacore-shard pixel axis
            vmem_limit_bytes=48 * 1024 * 1024,                 # headroom under v7x 64 MiB
        ),
    )(x, w, b)
    return out[:m]


# ------------------------------- glue (JAX) -------------------------------- #

def _im2col_3x3(x_pad_nhwc, ho, wo, sh, sw):
    """Nine 3x3 taps of an already-padded NHWC tensor, concatenated along
    channels: (N*ho*wo, 9*C), tap-major / channel-minor ordering."""
    n = x_pad_nhwc.shape[0]
    c = x_pad_nhwc.shape[-1]
    cols = []
    for dh in range(3):
        for dw in range(3):
            p = x_pad_nhwc[:, dh:dh + sh * (ho - 1) + 1:sh,
                              dw:dw + sw * (wo - 1) + 1:sw, :]
            cols.append(p.reshape(n * ho * wo, c))
    return jnp.concatenate(cols, axis=-1)


def _bn_fold(gamma, beta, mean, var, conv_bias, eps=1e-3):
    """Inference BN + conv bias -> per-channel (scale, bias)."""
    scale = gamma / jnp.sqrt(var + eps)
    bias = beta + (conv_bias - mean) * scale
    return scale.astype(jnp.float32), bias.astype(jnp.float32)


def _fold_conv_weight(w_oihw, scale):
    """OIHW (Cout,Cin,kh,kw) -> (kh*kw*Cin, Cout) with BN scale folded into columns.
    Row order matches _im2col_3x3: tap (kh,kw) major, input channel minor."""
    cout = w_oihw.shape[0]
    w = jnp.transpose(w_oihw, (2, 3, 1, 0)).reshape(-1, cout)
    return w * scale[None, :]


def _pad_cols(a, n_pad):
    return jnp.pad(a, ((0, 0), (0, n_pad - a.shape[-1])))


def residual_block_forward(x_nchw, p, st=(2, 1), *, tile_m=512):
    n, cin, h, w = x_nchw.shape
    cout = p['w1'].shape[0]
    sh, sw = st
    cout_pad = _round_up(cout, LANE)

    x = jnp.transpose(x_nchw, (0, 2, 3, 1)).astype(jnp.float32)        # NHWC

    # ---- conv1: 3x3 stride 1 pad 1 + BN + Swish, one wide-K matmul ----
    x_pad = jnp.pad(x, ((0, 0), (1, 1), (1, 1), (0, 0)))
    cols1 = _im2col_3x3(x_pad, h, w, 1, 1).astype(jnp.bfloat16)        # (N*H*W, 9*Cin)

    s1, b1 = _bn_fold(p['g1'], p['be1'], p['m1'], p['v1'], p['b1'])
    w1 = _pad_cols(_fold_conv_weight(p['w1'], s1), cout_pad).astype(jnp.bfloat16)
    bias1 = _pad_cols(b1.reshape(1, -1), cout_pad)

    tm1 = min(tile_m, _round_up(n * h * w, 16))
    z = fused_gemm_bias_swish(cols1, w1, bias1, tile_m=tm1)            # (N*H*W, Cpad) f32
    z = z[:, :cout].reshape(n, h, w, cout)

    # ---- conv2 (3x3 stride st pad 1 + BN) + 1x1 downsample (+BN) + add + Swish,
    #      fused as ONE matmul: downsample input appended as extra K columns ----
    ho = (h + 2 - 3) // sh + 1
    wo = (w + 2 - 3) // sw + 1
    z_pad = jnp.pad(z, ((0, 0), (1, 1), (1, 1), (0, 0)))
    cols2 = _im2col_3x3(z_pad, ho, wo, sh, sw)                         # (M2, 9*Cout)
    xds = x[:, 0:sh * (ho - 1) + 1:sh, 0:sw * (wo - 1) + 1:sw, :].reshape(-1, cin)
    cols2 = jnp.concatenate([cols2, xds], axis=-1).astype(jnp.bfloat16)  # (M2, 9*Cout+Cin)

    s2, b2 = _bn_fold(p['g2'], p['be2'], p['m2'], p['v2'], p['b2'])
    sd, bd = _bn_fold(p['gd'], p['bed'], p['md'], p['vd'], p['bd'])
    w2 = _fold_conv_weight(p['w2'], s2)                                # (9*Cout, Cout)
    wd = _fold_conv_weight(p['wd'], sd)                                # (Cin, Cout)
    w2cat = _pad_cols(jnp.concatenate([w2, wd], axis=0), cout_pad).astype(jnp.bfloat16)
    bias2 = _pad_cols((b2 + bd).reshape(1, -1), cout_pad)

    tm2 = min(tile_m, _round_up(n * ho * wo, 16))
    y = fused_gemm_bias_swish(cols2, w2cat, bias2, tile_m=tm2)         # (M2, Cpad)
    y = y[:, :cout].reshape(n, ho, wo, cout)
    return jnp.transpose(y, (0, 3, 1, 2))                              # back to NCHW


# ------------------------- deterministic parameters ------------------------ #

def init_params(key, cin, cout):
    ks = jax.random.split(key, 20)

    def conv_w(k, shape):
        fan_in = shape[1] * shape[2] * shape[3]
        return jax.random.uniform(k, shape, jnp.float32, -1.0, 1.0) / jnp.sqrt(fan_in)

    p = {}
    p['w1'] = conv_w(ks[0], (cout, cin, 3, 3))
    p['b1'] = 0.1 * jax.random.normal(ks[1], (cout,), jnp.float32)
    p['g1'] = 1.0 + 0.1 * jax.random.normal(ks[2], (cout,), jnp.float32)
    p['be1'] = 0.1 * jax.random.normal(ks[3], (cout,), jnp.float32)
    p['m1'] = 0.1 * jax.random.normal(ks[4], (cout,), jnp.float32)
    p['v1'] = 0.5 + jax.random.uniform(ks[5], (cout,), jnp.float32)

    p['w2'] = conv_w(ks[6], (cout, cout, 3, 3))
    p['b2'] = 0.1 * jax.random.normal(ks[7], (cout,), jnp.float32)
    p['g2'] = 1.0 + 0.1 * jax.random.normal(ks[8], (cout,), jnp.float32)
    p['be2'] = 0.1 * jax.random.normal(ks[9], (cout,), jnp.float32)
    p['m2'] = 0.1 * jax.random.normal(ks[10], (cout,), jnp.float32)
    p['v2'] = 0.5 + jax.random.uniform(ks[11], (cout,), jnp.float32)

    p['wd'] = conv_w(ks[12], (cout, cin, 1, 1))
    p['bd'] = 0.1 * jax.random.normal(ks[13], (cout,), jnp.float32)
    p['gd'] = 1.0 + 0.1 * jax.random.normal(ks[14], (cout,), jnp.float32)
    p['bed'] = 0.1 * jax.random.normal(ks[15], (cout,), jnp.float32)
    p['md'] = 0.1 * jax.random.normal(ks[16], (cout,), jnp.float32)
    p['vd'] = 0.5 + jax.random.uniform(ks[17], (cout,), jnp.float32)
    return p


# --------------------------- pure-JAX reference ---------------------------- #

def reference_forward(x, p, st=(2, 1), eps=1e-3):
    dn = ('NCHW', 'OIHW', 'NCHW')

    def bn(y, g, be, m, v):
        return ((y - m[None, :, None, None]) / jnp.sqrt(v[None, :, None, None] + eps)
                * g[None, :, None, None] + be[None, :, None, None])

    def swish(y):
        return y * jax.nn.sigmoid(y)

    hp = lax.Precision.HIGHEST
    y = lax.conv_general_dilated(x, p['w1'], (1, 1), [(1, 1), (1, 1)],
                                 dimension_numbers=dn, precision=hp)
    y = y + p['b1'][None, :, None, None]
    y = swish(bn(y, p['g1'], p['be1'], p['m1'], p['v1']))

    y2 = lax.conv_general_dilated(y, p['w2'], st, [(1, 1), (1, 1)],
                                  dimension_numbers=dn, precision=hp)
    y2 = y2 + p['b2'][None, :, None, None]
    y2 = bn(y2, p['g2'], p['be2'], p['m2'], p['v2'])

    yd = lax.conv_general_dilated(x, p['wd'], st, [(0, 0), (0, 0)],
                                  dimension_numbers=dn, precision=hp)
    yd = yd + p['bd'][None, :, None, None]
    yd = bn(yd, p['gd'], p['bed'], p['md'], p['vd'])
    return swish(y2 + yd)


# ----------------------------------- main ----------------------------------- #

if __name__ == "__main__":
    key = jax.random.PRNGKey(0)
    kx, kp = jax.random.split(key)

    N, Cin, H, W = 2, 4, 16, 16
    Cout = 8
    st = (2, 1)

    x = jax.random.normal(kx, (N, Cin, H, W), jnp.float32)
    params = init_params(kp, Cin, Cout)

    # tile_m=256 -> grid of 2 pixel tiles for conv1, 1 tile for conv2 at these shapes.
    out = jax.block_until_ready(residual_block_forward(x, params, st=st, tile_m=256))
    ref = jax.block_until_ready(reference_forward(x, params, st=st))

    Ho = (H + 2 - 3) // st[0] + 1
    Wo = (W + 2 - 3) // st[1] + 1
    assert out.shape == (N, Cout, Ho, Wo), out.shape
    # bf16 MXU operands (f32 accumulation) across two stacked convs -> bf16-class tolerance.
    np.testing.assert_allclose(np.asarray(out), np.asarray(ref), rtol=3e-2, atol=3e-2)

    print("KERNEL_OK")
</pallas_src>

<mosaic_0001>
module attributes {stable_mosaic.version = 11 : i64} {
  func.func @_gemm_bias_swish_kernel(%arg0: i32, %arg1: memref<256x36xbf16, #tpu.memory_space<vmem>>, %arg2: memref<36x128xbf16, #tpu.memory_space<vmem>>, %arg3: memref<1x128xf32, #tpu.memory_space<vmem>>, %arg4: memref<256x128xf32, #tpu.memory_space<vmem>>) attributes {dimension_semantics = [#tpu.dimension_semantics<parallel>], iteration_bounds = array<i64: 2>, scalar_prefetch = 0 : i64, scratch_operands = 0 : i64, tpu.core_type = #tpu.core_type<tc>, window_params = [{transform_indices = @transform_0, window_bounds = array<i64: 256, 36>}, {pipeline_mode = #tpu.pipeline_mode<synchronous>, transform_indices = @transform_1, window_bounds = array<i64: 36, 128>}, {pipeline_mode = #tpu.pipeline_mode<synchronous>, transform_indices = @transform_2, window_bounds = array<i64: 1, 128>}, {transform_indices = @transform_3, window_bounds = array<i64: 256, 128>}]} {
    %c0 = arith.constant 0 : index
    %c0_0 = arith.constant 0 : index
    %0 = vector.load %arg1[%c0, %c0_0] : memref<256x36xbf16, #tpu.memory_space<vmem>>, vector<256x36xbf16>
    %c0_1 = arith.constant 0 : index
    %c0_2 = arith.constant 0 : index
    %1 = vector.load %arg2[%c0_1, %c0_2] : memref<36x128xbf16, #tpu.memory_space<vmem>>, vector<36x128xbf16>
    %cst = arith.constant dense<0.000000e+00> : vector<256x128xf32>
    %2 = tpu.matmul %0, %1, %cst {dimension_numbers = #tpu.dot_dimension_numbers<[1], [0], [0], [1], [0, 0, 1, 1], [], []>} : vector<256x36xbf16>, vector<36x128xbf16>, vector<256x128xf32> -> vector<256x128xf32>
    %c0_3 = arith.constant 0 : index
    %c0_4 = arith.constant 0 : index
    %3 = vector.load %arg3[%c0_3, %c0_4] : memref<1x128xf32, #tpu.memory_space<vmem>>, vector<1x128xf32>
    %4 = vector.broadcast %3 : vector<1x128xf32> to vector<256x128xf32>
    %5 = arith.addf %2, %4 : vector<256x128xf32>
    %6 = arith.negf %5 : vector<256x128xf32>
    %7 = math.exp %6 : vector<256x128xf32>
    %cst_5 = arith.constant 1.000000e+00 : f32
    %8 = vector.broadcast %cst_5 : f32 to vector<256x128xf32>
    %9 = arith.addf %8, %7 : vector<256x128xf32>
    %10 = arith.divf %8, %9 : vector<256x128xf32>
    %11 = arith.mulf %5, %10 : vector<256x128xf32>
    %c0_6 = arith.constant 0 : index
    %c0_7 = arith.constant 0 : index
    %12 = vector.load %arg4[%c0_6, %c0_7] : memref<256x128xf32, #tpu.memory_space<vmem>>, vector<256x128xf32>
    tpu.vector_store %arg4[%c0_6, %c0_7], %11 {strides = array<i32>} : memref<256x128xf32, #tpu.memory_space<vmem>>, vector<256x128xf32>,
    return
  }
  func.func @transform_0(%arg0: i32) -> (i32, i32) {
    %c0_i32 = arith.constant 0 : i32
    %c0_i32_0 = arith.constant 0 : i32
    return %arg0, %c0_i32 : i32, i32
  }
  func.func @transform_1(%arg0: i32) -> (i32, i32) {
    %c0_i32 = arith.constant 0 : i32
    %c0_i32_0 = arith.constant 0 : i32
    %c0_i32_1 = arith.constant 0 : i32
    return %c0_i32, %c0_i32_0 : i32, i32
  }
  func.func @transform_2(%arg0: i32) -> (i32, i32) {
    %c0_i32 = arith.constant 0 : i32
    %c0_i32_0 = arith.constant 0 : i32
    %c0_i32_1 = arith.constant 0 : i32
    return %c0_i32, %c0_i32_0 : i32, i32
  }
  func.func @transform_3(%arg0: i32) -> (i32, i32) {
    %c0_i32 = arith.constant 0 : i32
    %c0_i32_0 = arith.constant 0 : i32
    return %arg0, %c0_i32 : i32, i32
  }
}

</mosaic_0001>

<llo_original>
// kernel: tpu_custom_call.1
$region0: #{tpu_custom_call.1}
  #allocation0 [shape = 'u32[]', space=smem, size = 0x4, offset = 0x4, fixed_abs, tag = 'smem constant byte address 0x4 - core index']
  #allocation1 [shape = 'u32[144,128]{1,0:T(1,128)}', space=vmem, size = 0x12000, scoped, tag = 'internal scratch']
  %s0 = inlined_call_operand.vmem [shape: bf16[512,36], index: 0, kind: input, shape index: {}]
  %s1 = inlined_call_operand.vmem [shape: bf16[36,128], index: 1, kind: input, shape index: {}]
  %s2 = inlined_call_operand.vmem [shape: f32[1,128], index: 2, kind: input, shape index: {}]
  %s3 = inlined_call_operand.hbm [shape: f32[512,128], index: 3, kind: output, shape index: {}]
  %s4 = sld [smem:[#allocation0]]
  $region45: #{tpu_custom_call.1} parent=0
    _
  %s6 = ssub.s32 1, %s4
  %s7 = scalar_select 0, %s6, %s4
  $region1: #{tpu_custom_call.1} parent=0
    #allocation2 [shape = 'u8[262144]{0}', space=vmem, size = 0x40000, scoped, tag = 'output window, operand 0']
    #allocation3 [shape = 's32[2]{0}', space=sflag, size = 0x8, scoped, tag = 'scoped memory for tpu_custom_call.1']
    %8 = vsyncpa [#allocation3], 0
    %s9 = scalar_lea.sflag [#allocation3], 1
    %10 = vsyncpa %s9, 0
    loop: start=0, step=1, limit=4
    $region2: #{tpu_custom_call.1} parent=1 // loop_pre_header
      _
    $region3: #{tpu_custom_call.1} parent=1 // loop_header
      %s12 = sphi 0, %s16
      %p13 = scmp.ge.s32.totalorder %s12, 4
      %s22 = sphi 0, %s24
      %s25 = sphi 0, %s22
      %s26 = sphi 0, %s25
      %s42 = sphi 0, %s26
      %s46 = sphi 0, %s46
      %s48 = sphi 0, %s46
      %s49 = sphi 0, %s48
      %s63 = sphi 0, %s49
      %s67 = sphi 0, %s67
      %s69 = sphi 0, %s67
      %s70 = sphi 0, %s69
      %s84 = sphi 0, %s70
      %s90 = sphi 0, %s92
      %s93 = sphi 0, %s90
      %s94 = sphi 0, %s93
      %s110 = sphi 0, %s94
    $region4: #{tpu_custom_call.1} parent=1 // loop_header_branch
      %15 = sbr.rel (%p13) target = $region8
    $region5: #{tpu_custom_call.1} parent=1 // loop_body
      %s17 = ssub.s32 %s12, 1
      %s18 = ssub.s32 %s12, 2
      %s19 = sadd.s32 %s12, 1
      %s20 = ssub.s32 %s12, %s19
      %p21 = scmp.eq.s32.totalorder %s20, 0
      %s23 = sadd.s32 %s22, 1
      %s24 = scalar_select %p21, %s22, %s23
      %p27 = pneg %p21
      %p28 = scmp.eq.s32.totalorder %s12, 1
      %p29 = por %p27, %p28
      %p30 = scmp.ne.s32.totalorder %s22, %s25
      %p31 = scmp.eq.s32.totalorder %s12, 0
      %p32 = por %p30, %p31
      %p33 = scmp.ne.s32.totalorder %s22, %s25
      %p34 = scmp.eq.s32.totalorder %s17, 1
      %p35 = por %p33, %p34
      %p36 = scmp.ne.s32.totalorder %s25, %s26
      %p37 = scmp.eq.s32.totalorder %s17, 0
      %p38 = por %p36, %p37
      %p39 = scmp.ne.s32.totalorder %s25, %s26
      %p40 = scmp.eq.s32.totalorder %s18, 1
      %p41 = por %p39, %p40
      %p43 = scmp.ne.s32.totalorder %s26, %s42
      %p44 = scmp.eq.s32.totalorder %s18, 0
      %p45 = por %p43, %p44
      %s47 = sadd.s32 %s46, 1
      %p50 = scmp.eq.s32.totalorder %s12, 1
      %p51 = scmp.ne.s32.totalorder %s46, %s48
      %p52 = scmp.eq.s32.totalorder %s12, 0
      %p53 = por %p51, %p52
      %p54 = scmp.ne.s32.totalorder %s46, %s48
      %p55 = scmp.eq.s32.totalorder %s17, 1
      %p56 = por %p54, %p55
      %p57 = scmp.ne.s32.totalorder %s48, %s49
      %p58 = scmp.eq.s32.totalorder %s17, 0
      %p59 = por %p57, %p58
      %p60 = scmp.ne.s32.totalorder %s48, %s49
      %p61 = scmp.eq.s32.totalorder %s18, 1
      %p62 = por %p60, %p61
      %p64 = scmp.ne.s32.totalorder %s49, %s63
      %p65 = scmp.eq.s32.totalorder %s18, 0
      %p66 = por %p64, %p65
      %s68 = sadd.s32 %s67, 1
      %p71 = scmp.eq.s32.totalorder %s12, 1
      %p72 = scmp.ne.s32.totalorder %s67, %s69
      %p73 = scmp.eq.s32.totalorder %s12, 0
      %p74 = por %p72, %p73
      %p75 = scmp.ne.s32.totalorder %s67, %s69
      %p76 = scmp.eq.s32.totalorder %s17, 1
      %p77 = por %p75, %p76
      %p78 = scmp.ne.s32.totalorder %s69, %s70
      %p79 = scmp.eq.s32.totalorder %s17, 0
      %p80 = por %p78, %p79
      %p81 = scmp.ne.s32.totalorder %s69, %s70
      %p82 = scmp.eq.s32.totalorder %s18, 1
      %p83 = por %p81, %p82
      %p85 = scmp.ne.s32.totalorder %s70, %s84
      %p86 = scmp.eq.s32.totalorder %s18, 0
      %p87 = por %p85, %p86
      %s88 = ssub.s32 %s12, %s19
      %p89 = scmp.eq.s32.totalorder %s88, 0
      %s91 = sadd.s32 %s90, 1
      %s92 = scalar_select %p89, %s90, %s91
      %p95 = pneg %p89
      %p96 = scmp.eq.s32.totalorder %s12, 1
      %p97 = por %p95, %p96
      %p98 = scmp.ne.s32.totalorder %s90, %s93
      %p99 = scmp.eq.s32.totalorder %s12, 0
      %p100 = por %p98, %p99
      %p101 = scmp.ne.s32.totalorder %s90, %s93
      %p102 = scmp.eq.s32.totalorder %s17, 1
      %p103 = por %p101, %p102
      %p104 = scmp.ne.s32.totalorder %s93, %s94
      %p105 = scmp.eq.s32.totalorder %s17, 0
      %p106 = por %p104, %p105
      %p107 = scmp.ne.s32.totalorder %s93, %s94
      %p108 = scmp.eq.s32.totalorder %s18, 1
      %p109 = por %p107, %p108
      %p111 = scmp.ne.s32.totalorder %s94, %s110
      %p112 = scmp.eq.s32.totalorder %s18, 0
      %p113 = por %p111, %p112
      %p114 = scmp.le.s32.totalorder 1, %s12
      %p115 = scmp.lt.s32.totalorder %s12, 3
      %p116 = pnand %p114, %p115
      %p117 = pneg %p116
      // Predicated region
      $region9: #{tpu_custom_call.1} parent=5 // pred_check
        _
      $region10: #{tpu_custom_call.1} parent=5 // pred_check_branch
        %119 = sbr.rel (%p116) target = $region12
      $region11: #{tpu_custom_call.1} parent=5 // pred_region
        %s120 = ssub.s32 %s12, 1
        // Predicated region
        $region13: #{tpu_custom_call.1} parent=11 // pred_check
          %p121 = pneg %p59
        $region14: #{tpu_custom_call.1} parent=11 // pred_check_branch
          %123 = sbr.rel (%p121) target = $region16
        $region15: #{tpu_custom_call.1} parent=11 // pred_region
          _
        $region16: #{tpu_custom_call.1} parent=11 // pred_fallthru
          _
        // Predicated region
        $region17: #{tpu_custom_call.1} parent=11 // pred_check
          %p124 = pneg %p80
        $region18: #{tpu_custom_call.1} parent=11 // pred_check_branch
          %126 = sbr.rel (%p124) target = $region20
        $region19: #{tpu_custom_call.1} parent=11 // pred_region
          _
        $region20: #{tpu_custom_call.1} parent=11 // pred_fallthru
          _
      $region12: #{tpu_custom_call.1} parent=5 // pred_fallthru
        _
      %p127 = scmp.lt.s32.totalorder %s12, 2
      // Predicated region
      $region21: #{tpu_custom_call.1} parent=5 // pred_check
        %p128 = pneg %p127
      $region22: #{tpu_custom_call.1} parent=5 // pred_check_branch
        %130 = sbr.rel (%p128) target = $region24
      $region23: #{tpu_custom_call.1} parent=5 // pred_region
        // Predicated region
        $region25: #{tpu_custom_call.1} parent=23 // pred_check
          %p131 = pneg %p32
        $region26: #{tpu_custom_call.1} parent=23 // pred_check_branch
          %133 = sbr.rel (%p131) target = $region28
        $region27: #{tpu_custom_call.1} parent=23 // pred_region
          %s134 = smul.u32 32, %s12
          %p135 = scmp.lt.s32.totalorder %s134, 63
          %s136 = scalar_select %p135, %s134, 63
          %s137 = smul.addr %s136, 4
          %s138 = scalar_lea.vmem %s0, %s137
          %s139 = smul.u32 32, %s12
        $region28: #{tpu_custom_call.1} parent=23 // pred_fallthru
          _
      $region24: #{tpu_custom_call.1} parent=5 // pred_fallthru
        _
      %p140 = scmp.le.s32.totalorder 1, %s12
      %p141 = scmp.lt.s32.totalorder %s12, 3
      %p142 = pnand %p140, %p141
      %p143 = pneg %p142
      // Predicated region
      $region29: #{tpu_custom_call.1} parent=5 // pred_check
        _
      $region30: #{tpu_custom_call.1} parent=5 // pred_check_branch
        %145 = sbr.rel (%p142) target = $region32
      $region31: #{tpu_custom_call.1} parent=5 // pred_region
        %s146 = ssub.s32 %s12, 1
        %s147 = smul.u32 32, %s17
        %p148 = scmp.lt.s32.totalorder %s147, 63
        %s149 = scalar_select %p148, %s147, 63
        %s150 = smul.addr %s149, 4
        %s151 = scalar_lea.vmem %s0, %s150
        %p152 = pneg %p38
        %p153 = pneg %p35
        %p154 = pneg %p59
        %p155 = pneg %p56
        %p156 = pneg %p80
        %p157 = pneg %p77
        %p158 = pneg %p106
        %p159 = pneg %p103
        %s160 = sand.u32 %s93, 1
        %s161 = scalar_lea.sflag [#allocation3], %s160
        %s162 = sand.u32 %s93, 1
        %s163 = smul.addr %s162, 256
        %s164 = scalar_lea.vmem [#allocation2], %s163
        %s165 = smul.u32 32, %s17
        %p166 = scmp.lt.s32.totalorder %s165, 63
        %s167 = scalar_select %p166, %s165, 63
        %s168 = smul.addr %s167, 4
        %s169 = scalar_lea.vmem %s0, %s168
        %s170 = smul.u32 32, %s17
        %s171 = smul.u32 32, %s17
        %v173 = vld [vmem:[%s169] sm:$0xf]
        %v174 = vld [vmem:[%s169 + $0x4] sm:$0xf]
        %v175 = vld [vmem:[%s169 + $0x8] sm:$0xf]
        %v176 = vld [vmem:[%s169 + $0xc] sm:$0xf]
        %v177 = vld [vmem:[%s169 + $0x10] sm:$0xf]
        %v178 = vld [vmem:[%s169 + $0x14] sm:$0xf]
        %v179 = vld [vmem:[%s169 + $0x18] sm:$0xf]
        %v180 = vld [vmem:[%s169 + $0x1c] sm:$0xf]
        %v181 = vld [vmem:[%s169 + $0x20] sm:$0xf]
        %v182 = vld [vmem:[%s169 + $0x24] sm:$0xf]
        %v183 = vld [vmem:[%s169 + $0x28] sm:$0xf]
        %v184 = vld [vmem:[%s169 + $0x2c] sm:$0xf]
        %v185 = vld [vmem:[%s169 + $0x30] sm:$0xf]
        %v186 = vld [vmem:[%s169 + $0x34] sm:$0xf]
        %v187 = vld [vmem:[%s169 + $0x38] sm:$0xf]
        %v188 = vld [vmem:[%s169 + $0x3c] sm:$0xf]
        %v189 = vld [vmem:[%s169 + $0x40] sm:$0xf]
        %v190 = vld [vmem:[%s169 + $0x44] sm:$0xf]
        %v191 = vld [vmem:[%s169 + $0x48] sm:$0xf]
        %v192 = vld [vmem:[%s169 + $0x4c] sm:$0xf]
        %v193 = vld [vmem:[%s169 + $0x50] sm:$0xf]
        %v194 = vld [vmem:[%s169 + $0x54] sm:$0xf]
        %v195 = vld [vmem:[%s169 + $0x58] sm:$0xf]
        %v196 = vld [vmem:[%s169 + $0x5c] sm:$0xf]
        %v197 = vld [vmem:[%s169 + $0x60] sm:$0xf]
        %v198 = vld [vmem:[%s169 + $0x64] sm:$0xf]
        %v199 = vld [vmem:[%s169 + $0x68] sm:$0xf]
        %v200 = vld [vmem:[%s169 + $0x6c] sm:$0xf]
        %v201 = vld [vmem:[%s169 + $0x70] sm:$0xf]
        %v202 = vld [vmem:[%s169 + $0x74] sm:$0xf]
        %v203 = vld [vmem:[%s169 + $0x78] sm:$0xf]
        %v204 = vld [vmem:[%s169 + $0x7c] sm:$0xf]
        %v205 = vld [vmem:[%s1] sm:$0xf]
        %v206 = vld [vmem:[%s1 + $0x4] sm:$0xf]
        %v207 = vld [vmem:[%s1 + $0x8] sm:$0xf]
        %v208 = vld [vmem:[%s1 + $0xc] sm:$0xf]
        %v209 = vld [vmem:[%s1 + $0x10] sm:$0x3]
        %v210 = vld [vmem:[%s2] sm:$0x1]
        %v212 = vlaneseq
        %v213 = vshrl.u32 %v212, 7
        %v214 = vsub.s32 0, %v213
        %v215 = vrot.slane %v210, %v214
        %v249 = vunpack.c.l.b16 %v173
        %v250 = vunpack.c.l.b16 %v174
        %v251 = vunpack.c.l.b16 %v175
        %v252 = vunpack.c.l.b16 %v176
        %v253 = vunpack.c.l.b16 %v177
        %v254 = vunpack.c.l.b16 %v178
        %v255 = vunpack.c.l.b16 %v179
        %v256 = vunpack.c.l.b16 %v180
        %v257 = vunpack.c.l.b16 %v181
        %v258 = vunpack.c.l.b16 %v182
        %v259 = vunpack.c.l.b16 %v183
        %v260 = vunpack.c.l.b16 %v184
        %v261 = vunpack.c.l.b16 %v185
        %v262 = vunpack.c.l.b16 %v186
        %v263 = vunpack.c.l.b16 %v187
        %v264 = vunpack.c.l.b16 %v188
        %v265 = vunpack.c.l.b16 %v189
        %v266 = vunpack.c.l.b16 %v190
        %v267 = vunpack.c.l.b16 %v191
        %v268 = vunpack.c.l.b16 %v192
        %v269 = vunpack.c.l.b16 %v193
        %v270 = vunpack.c.l.b16 %v194
        %v271 = vunpack.c.l.b16 %v195
        %v272 = vunpack.c.l.b16 %v196
        %v273 = vunpack.c.l.b16 %v197
        %v274 = vunpack.c.l.b16 %v198
        %v275 = vunpack.c.l.b16 %v199
        %v276 = vunpack.c.l.b16 %v200
        %v277 = vunpack.c.l.b16 %v201
        %v278 = vunpack.c.l.b16 %v202
        %v279 = vunpack.c.l.b16 %v203
        %v280 = vunpack.c.l.b16 %v204
        %v281 = vpack.c.b16 %v250, %v249
        %v282 = vpack.c.b16 %v252, %v251
        %v283 = vpack.c.b16 %v254, %v253
        %v284 = vpack.c.b16 %v256, %v255
        %v285 = vpack.c.b16 %v258, %v257
        %v286 = vpack.c.b16 %v260, %v259
        %v287 = vpack.c.b16 %v262, %v261
        %v288 = vpack.c.b16 %v264, %v263
        %v289 = vpack.c.b16 %v266, %v265
        %v290 = vpack.c.b16 %v268, %v267
        %v291 = vpack.c.b16 %v270, %v269
        %v292 = vpack.c.b16 %v272, %v271
        %v293 = vpack.c.b16 %v274, %v273
        %v294 = vpack.c.b16 %v276, %v275
        %v295 = vpack.c.b16 %v278, %v277
        %v296 = vpack.c.b16 %v280, %v279
        %v302 = vunpack.c.l.b16 %v205
        %v303 = vunpack.c.l.b16 %v206
        %v304 = vunpack.c.l.b16 %v207
        %v305 = vunpack.c.l.b16 %v208
        %v306 = vunpack.c.l.b16 %v209
        %v307 = vpack.c.b16 %v303, %v302
        %v308 = vpack.c.b16 %v305, %v304
        %v309 = vpack.c.b16 %v306, %v306
        %vm312 = vcmask 293888
        %v314 = vsel %vm312, %v281, 0
        %v317 = vsel %vm312, %v282, 0
        %v320 = vsel %vm312, %v283, 0
        %v323 = vsel %vm312, %v284, 0
        %v326 = vsel %vm312, %v285, 0
        %v329 = vsel %vm312, %v286, 0
        %v332 = vsel %vm312, %v287, 0
        %v335 = vsel %vm312, %v288, 0
        %v338 = vsel %vm312, %v289, 0
        %v341 = vsel %vm312, %v290, 0
        %v344 = vsel %vm312, %v291, 0
        %v347 = vsel %vm312, %v292, 0
        %v350 = vsel %vm312, %v293, 0
        %v353 = vsel %vm312, %v294, 0
        %v356 = vsel %vm312, %v295, 0
        %v359 = vsel %vm312, %v296, 0
        %vm361 = vcmask 1041408
        %v363 = vsel %vm361, %v309, 0
        %365 = vmatprep.subr.bf16.mxu0 0
        %366 = vmatpush1.bf16.msra.mxu0 %v307
        %367 = vmatprep.subr.bf16.mxu0 0
        %368 = vmatpush1.bf16.msra.mxu0 %v308
        %369 = vmatprep.subr.bf16.mxu0 0
        %370 = vmatpush1.bf16.msra.mxu0 %v363
        %371 = vmatprep.subr.bf16.mxu0 0
        %372 = vmatpush1.bf16.msra.mxu0 0
        %373 = vmatprep.subr.bf16.mxu0 0
        %374 = vmatpush1.bf16.msra.mxu0 0
        %375 = vmatprep.subr.bf16.mxu0 0
        %376 = vmatpush1.bf16.msra.mxu0 0
        %377 = vmatprep.subr.bf16.mxu0 0
        %378 = vmatpush1.bf16.msra.mxu0 0
        %379 = vmatprep.subr.bf16.mxu0 0
        %380 = vmatpush1.bf16.msra.mxu0 0
        %381 = vmatprep.subr.bf16.mxu0 0
        %382 = vmatpush1.bf16.msra.mxu0 0
        %383 = vmatprep.subr.bf16.mxu0 0
        %384 = vmatpush1.bf16.msra.mxu0 0
        %385 = vmatprep.subr.bf16.mxu0 0
        %386 = vmatpush1.bf16.msra.mxu0 0
        %387 = vmatprep.subr.bf16.mxu0 0
        %388 = vmatpush1.bf16.msra.mxu0 0
        %389 = vmatprep.subr.bf16.mxu0 0
        %390 = vmatpush1.bf16.msra.mxu0 0
        %391 = vmatprep.subr.bf16.mxu0 0
        %392 = vmatpush1.bf16.msra.mxu0 0
        %393 = vmatprep.subr.bf16.mxu0 0
        %394 = vmatpush1.bf16.msra.mxu0 0
        %395 = vmatprep.subr.bf16.mxu0 0
        %396 = vmatpush1.bf16.msra.mxu0 0
        %397 = vmatprep.mubr.bf16.mxu0 0
        %398 = vmatmul.mubr.bf16.gmra.mrb[0].mxu0 %v314
        %v399 = vpop.f32.mrb[0].mxu0
        %v400 = vadd.f32 %v215, %v399
        %v401 = vpop.f32.mrb[0].mxu0
        %v402 = vpop.f32.mrb[0].mxu0
        %v403 = vadd.f32 %v215, %v402
        %v404 = vpop.f32.mrb[0].mxu0
        %405 = vmatprep.mubr.bf16.mxu0 0
        %406 = vmatmul.mubr.bf16.gmra.mrb[0].mxu0 %v317
        %v407 = vpop.f32.mrb[0].mxu0
        %v408 = vadd.f32 %v215, %v407
        %v409 = vpop.f32.mrb[0].mxu0
        %v410 = vpop.f32.mrb[0].mxu0
        %v411 = vadd.f32 %v215, %v410
        %v412 = vpop.f32.mrb[0].mxu0
        %413 = vmatprep.mubr.bf16.mxu0 0
        %414 = vmatmul.mubr.bf16.gmra.mrb[0].mxu0 %v320
        %v415 = vpop.f32.mrb[0].mxu0
        %v416 = vadd.f32 %v215, %v415
        %v417 = vpop.f32.mrb[0].mxu0
        %v418 = vpop.f32.mrb[0].mxu0
        %v419 = vadd.f32 %v215, %v418
        %v420 = vpop.f32.mrb[0].mxu0
        %421 = vmatprep.mubr.bf16.mxu0 0
        %422 = vmatmul.mubr.bf16.gmra.mrb[0].mxu0 %v323
        %v423 = vpop.f32.mrb[0].mxu0
        %v424 = vadd.f32 %v215, %v423
        %v425 = vpop.f32.mrb[0].mxu0
        %v426 = vpop.f32.mrb[0].mxu0
        %v427 = vadd.f32 %v215, %v426
        %v428 = vpop.f32.mrb[0].mxu0
        %429 = vmatprep.mubr.bf16.mxu0 0
        %430 = vmatmul.mubr.bf16.gmra.mrb[0].mxu0 %v326
        %v431 = vpop.f32.mrb[0].mxu0
        %v432 = vadd.f32 %v215, %v431
        %v433 = vpop.f32.mrb[0].mxu0
        %v434 = vpop.f32.mrb[0].mxu0
        %v435 = vadd.f32 %v215, %v434
        %v436 = vpop.f32.mrb[0].mxu0
        %437 = vmatprep.mubr.bf16.mxu0 0
        %438 = vmatmul.mubr.bf16.gmra.mrb[0].mxu0 %v329
        %v439 = vpop.f32.mrb[0].mxu0
        %v440 = vadd.f32 %v215, %v439
        %v441 = vpop.f32.mrb[0].mxu0
        %v442 = vpop.f32.mrb[0].mxu0
        %v443 = vadd.f32 %v215, %v442
        %v444 = vpop.f32.mrb[0].mxu0
        %445 = vmatprep.mubr.bf16.mxu0 0
        %446 = vmatmul.mubr.bf16.gmra.mrb[0].mxu0 %v332
        %v447 = vpop.f32.mrb[0].mxu0
        %v448 = vadd.f32 %v215, %v447
        %v449 = vpop.f32.mrb[0].mxu0
        %v450 = vpop.f32.mrb[0].mxu0
        %v451 = vadd.f32 %v215, %v450
        %v452 = vpop.f32.mrb[0].mxu0
        %453 = vmatprep.mubr.bf16.mxu0 0
        %454 = vmatmul.mubr.bf16.gmra.mrb[0].mxu0 %v335
        %v455 = vpop.f32.mrb[0].mxu0
        %v456 = vadd.f32 %v215, %v455
        %v457 = vpop.f32.mrb[0].mxu0
        %v458 = vpop.f32.mrb[0].mxu0
        %v459 = vadd.f32 %v215, %v458
        %v460 = vpop.f32.mrb[0].mxu0
        %461 = vmatprep.mubr.bf16.mxu0 0
        %462 = vmatmul.mubr.bf16.gmra.mrb[0].mxu0 %v338
        %v463 = vpop.f32.mrb[0].mxu0
        %v464 = vadd.f32 %v215, %v463
        %v465 = vpop.f32.mrb[0].mxu0
        %v466 = vpop.f32.mrb[0].mxu0
        %v467 = vadd.f32 %v215, %v466
        %v468 = vpop.f32.mrb[0].mxu0
        %469 = vmatprep.mubr.bf16.mxu0 0
        %470 = vmatmul.mubr.bf16.gmra.mrb[0].mxu0 %v341
        %v471 = vpop.f32.mrb[0].mxu0
        %v472 = vadd.f32 %v215, %v471
        %v473 = vpop.f32.mrb[0].mxu0
        %v474 = vpop.f32.mrb[0].mxu0
        %v475 = vadd.f32 %v215, %v474
        %v476 = vpop.f32.mrb[0].mxu0
        %477 = vmatprep.mubr.bf16.mxu0 0
        %478 = vmatmul.mubr.bf16.gmra.mrb[0].mxu0 %v344
        %v479 = vpop.f32.mrb[0].mxu0
        %v480 = vadd.f32 %v215, %v479
        %v481 = vpop.f32.mrb[0].mxu0
        %v482 = vpop.f32.mrb[0].mxu0
        %v483 = vadd.f32 %v215, %v482
        %v484 = vpop.f32.mrb[0].mxu0
        %485 = vmatprep.mubr.bf16.mxu0 0
        %486 = vmatmul.mubr.bf16.gmra.mrb[0].mxu0 %v347
        %v487 = vpop.f32.mrb[0].mxu0
        %v488 = vadd.f32 %v215, %v487
        %v489 = vpop.f32.mrb[0].mxu0
        %v490 = vpop.f32.mrb[0].mxu0
        %v491 = vadd.f32 %v215, %v490
        %v492 = vpop.f32.mrb[0].mxu0
        %493 = vmatprep.mubr.bf16.mxu0 0
        %494 = vmatmul.mubr.bf16.gmra.mrb[0].mxu0 %v350
        %v495 = vpop.f32.mrb[0].mxu0
        %v496 = vadd.f32 %v215, %v495
        %v497 = vpop.f32.mrb[0].mxu0
        %v498 = vpop.f32.mrb[0].mxu0
        %v499 = vadd.f32 %v215, %v498
        %v500 = vpop.f32.mrb[0].mxu0
        %501 = vmatprep.mubr.bf16.mxu0 0
        %502 = vmatmul.mubr.bf16.gmra.mrb[0].mxu0 %v353
        %v503 = vpop.f32.mrb[0].mxu0
        %v504 = vadd.f32 %v215, %v503
        %v505 = vpop.f32.mrb[0].mxu0
        %v506 = vpop.f32.mrb[0].mxu0
        %v507 = vadd.f32 %v215, %v506
        %v508 = vpop.f32.mrb[0].mxu0
        %509 = vmatprep.mubr.bf16.mxu0 0
        %510 = vmatmul.mubr.bf16.gmra.mrb[0].mxu0 %v356
        %v511 = vpop.f32.mrb[0].mxu0
        %v512 = vadd.f32 %v215, %v511
        %v513 = vpop.f32.mrb[0].mxu0
        %v514 = vpop.f32.mrb[0].mxu0
        %v515 = vadd.f32 %v215, %v514
        %v516 = vpop.f32.mrb[0].mxu0
        %517 = vmatprep.mubr.bf16.mxu0 0
        %518 = vmatmul.mubr.bf16.gmra.mrb[0].mxu0 %v359
        %v519 = vpop.f32.mrb[0].mxu0
        %v520 = vadd.f32 %v215, %v519
        %v521 = vpop.f32.mrb[0].mxu0
        %v522 = vpop.f32.mrb[0].mxu0
        %v523 = vadd.f32 %v215, %v522
        %v524 = vpop.f32.mrb[0].mxu0
        %525 = vdwg.mxu0
        %v526 = vxor.u32 %v400, 2147483648
        %v527 = vxor.u32 %v403, 2147483648
        %v528 = vxor.u32 %v408, 2147483648
        %v529 = vxor.u32 %v411, 2147483648
        %v530 = vxor.u32 %v416, 2147483648
        %v531 = vxor.u32 %v419, 2147483648
        %v532 = vxor.u32 %v424, 2147483648
        %v533 = vxor.u32 %v427, 2147483648
        %v534 = vxor.u32 %v432, 2147483648
        %v535 = vxor.u32 %v435, 2147483648
        %v536 = vxor.u32 %v440, 2147483648
        %v537 = vxor.u32 %v443, 2147483648
        %v538 = vxor.u32 %v448, 2147483648
        %v539 = vxor.u32 %v451, 2147483648
        %v540 = vxor.u32 %v456, 2147483648
        %v541 = vxor.u32 %v459, 2147483648
        %v542 = vxor.u32 %v464, 2147483648
        %v543 = vxor.u32 %v467, 2147483648
        %v544 = vxor.u32 %v472, 2147483648
        %v545 = vxor.u32 %v475, 2147483648
        %v546 = vxor.u32 %v480, 2147483648
        %v547 = vxor.u32 %v483, 2147483648
        %v548 = vxor.u32 %v488, 2147483648
        %v549 = vxor.u32 %v491, 2147483648
        %v550 = vxor.u32 %v496, 2147483648
        %v551 = vxor.u32 %v499, 2147483648
        %v552 = vxor.u32 %v504, 2147483648
        %v553 = vxor.u32 %v507, 2147483648
        %v554 = vxor.u32 %v512, 2147483648
        %v555 = vxor.u32 %v515, 2147483648
        %v556 = vxor.u32 %v520, 2147483648
        %v557 = vxor.u32 %v523, 2147483648
        %v558 = vmul.f32 %v526, 1.442695
        %v559 = vpow.pop %v558
        %v560 = vmul.f32 %v527, 1.442695
        %v561 = vpow.pop %v560
        %v562 = vmul.f32 %v528, 1.442695
        %v563 = vpow.pop %v562
        %v564 = vmul.f32 %v529, 1.442695
        %v565 = vpow.pop %v564
        %v566 = vmul.f32 %v530, 1.442695
        %v567 = vpow.pop %v566
        %v568 = vmul.f32 %v531, 1.442695
        %v569 = vpow.pop %v568
        %v570 = vmul.f32 %v532, 1.442695
        %v571 = vpow.pop %v570
        %v572 = vmul.f32 %v533, 1.442695
        %v573 = vpow.pop %v572
        %v574 = vmul.f32 %v534, 1.442695
        %v575 = vpow.pop %v574
        %v576 = vmul.f32 %v535, 1.442695
        %v577 = vpow.pop %v576
        %v578 = vmul.f32 %v536, 1.442695
        %v579 = vpow.pop %v578
        %v580 = vmul.f32 %v537, 1.442695
        %v581 = vpow.pop %v580
        %v582 = vmul.f32 %v538, 1.442695
        %v583 = vpow.pop %v582
        %v584 = vmul.f32 %v539, 1.442695
        %v585 = vpow.pop %v584
        %v586 = vmul.f32 %v540, 1.442695
        %v587 = vpow.pop %v586
        %v588 = vmul.f32 %v541, 1.442695
        %v589 = vpow.pop %v588
        %v590 = vmul.f32 %v542, 1.442695
        %v591 = vpow.pop %v590
        %v592 = vmul.f32 %v543, 1.442695
        %v593 = vpow.pop %v592
        %v594 = vmul.f32 %v544, 1.442695
        %v595 = vpow.pop %v594
        %v596 = vmul.f32 %v545, 1.442695
        %v597 = vpow.pop %v596
        %v598 = vmul.f32 %v546, 1.442695
        %v599 = vpow.pop %v598
        %v600 = vmul.f32 %v547, 1.442695
        %v601 = vpow.pop %v600
        %v602 = vmul.f32 %v548, 1.442695
        %v603 = vpow.pop %v602
        %v604 = vmul.f32 %v549, 1.442695
        %v605 = vpow.pop %v604
        %v606 = vmul.f32 %v550, 1.442695
        %v607 = vpow.pop %v606
        %v608 = vmul.f32 %v551, 1.442695
        %v609 = vpow.pop %v608
        %v610 = vmul.f32 %v552, 1.442695
        %v611 = vpow.pop %v610
        %v612 = vmul.f32 %v553, 1.442695
        %v613 = vpow.pop %v612
        %v614 = vmul.f32 %v554, 1.442695
        %v615 = vpow.pop %v614
        %v616 = vmul.f32 %v555, 1.442695
        %v617 = vpow.pop %v616
        %v618 = vmul.f32 %v556, 1.442695
        %v619 = vpow.pop %v618
        %v620 = vmul.f32 %v557, 1.442695
        %v621 = vpow.pop %v620
        %v622 = vadd.f32 %v559, 1.0
        %v623 = vadd.f32 %v561, 1.0
        %v624 = vadd.f32 %v563, 1.0
        %v625 = vadd.f32 %v565, 1.0
        %v626 = vadd.f32 %v567, 1.0
        %v627 = vadd.f32 %v569, 1.0
        %v628 = vadd.f32 %v571, 1.0
        %v629 = vadd.f32 %v573, 1.0
        %v630 = vadd.f32 %v575, 1.0
        %v631 = vadd.f32 %v577, 1.0
        %v632 = vadd.f32 %v579, 1.0
        %v633 = vadd.f32 %v581, 1.0
        %v634 = vadd.f32 %v583, 1.0
        %v635 = vadd.f32 %v585, 1.0
        %v636 = vadd.f32 %v587, 1.0
        %v637 = vadd.f32 %v589, 1.0
        %v638 = vadd.f32 %v591, 1.0
        %v639 = vadd.f32 %v593, 1.0
        %v640 = vadd.f32 %v595, 1.0
        %v641 = vadd.f32 %v597, 1.0
        %v642 = vadd.f32 %v599, 1.0
        %v643 = vadd.f32 %v601, 1.0
        %v644 = vadd.f32 %v603, 1.0
        %v645 = vadd.f32 %v605, 1.0
        %v646 = vadd.f32 %v607, 1.0
        %v647 = vadd.f32 %v609, 1.0
        %v648 = vadd.f32 %v611, 1.0
        %v649 = vadd.f32 %v613, 1.0
        %v650 = vadd.f32 %v615, 1.0
        %v651 = vadd.f32 %v617, 1.0
        %v652 = vadd.f32 %v619, 1.0
        %v653 = vadd.f32 %v621, 1.0
        %v654 = vrcp.pop %v622
        %v655 = vmul.f32 1.0, %v654
        %v656 = vrcp.pop %v623
        %v657 = vmul.f32 1.0, %v656
        %v658 = vrcp.pop %v624
        %v659 = vmul.f32 1.0, %v658
        %v660 = vrcp.pop %v625
        %v661 = vmul.f32 1.0, %v660
        %v662 = vrcp.pop %v626
        %v663 = vmul.f32 1.0, %v662
        %v664 = vrcp.pop %v627
        %v665 = vmul.f32 1.0, %v664
        %v666 = vrcp.pop %v628
        %v667 = vmul.f32 1.0, %v666
        %v668 = vrcp.pop %v629
        %v669 = vmul.f32 1.0, %v668
        %v670 = vrcp.pop %v630
        %v671 = vmul.f32 1.0, %v670
        %v672 = vrcp.pop %v631
        %v673 = vmul.f32 1.0, %v672
        %v674 = vrcp.pop %v632
        %v675 = vmul.f32 1.0, %v674
        %v676 = vrcp.pop %v633
        %v677 = vmul.f32 1.0, %v676
        %v678 = vrcp.pop %v634
        %v679 = vmul.f32 1.0, %v678
        %v680 = vrcp.pop %v635
        %v681 = vmul.f32 1.0, %v680
        %v682 = vrcp.pop %v636
        %v683 = vmul.f32 1.0, %v682
        %v684 = vrcp.pop %v637
        %v685 = vmul.f32 1.0, %v684
        %v686 = vrcp.pop %v638
        %v687 = vmul.f32 1.0, %v686
        %v688 = vrcp.pop %v639
        %v689 = vmul.f32 1.0, %v688
        %v690 = vrcp.pop %v640
        %v691 = vmul.f32 1.0, %v690
        %v692 = vrcp.pop %v641
        %v693 = vmul.f32 1.0, %v692
        %v694 = vrcp.pop %v642
        %v695 = vmul.f32 1.0, %v694
        %v696 = vrcp.pop %v643
        %v697 = vmul.f32 1.0, %v696
        %v698 = vrcp.pop %v644
        %v699 = vmul.f32 1.0, %v698
        %v700 = vrcp.pop %v645
        %v701 = vmul.f32 1.0, %v700
        %v702 = vrcp.pop %v646
        %v703 = vmul.f32 1.0, %v702
        %v704 = vrcp.pop %v647
        %v705 = vmul.f32 1.0, %v704
        %v706 = vrcp.pop %v648
        %v707 = vmul.f32 1.0, %v706
        %v708 = vrcp.pop %v649
        %v709 = vmul.f32 1.0, %v708
        %v710 = vrcp.pop %v650
        %v711 = vmul.f32 1.0, %v710
        %v712 = vrcp.pop %v651
        %v713 = vmul.f32 1.0, %v712
        %v714 = vrcp.pop %v652
        %v715 = vmul.f32 1.0, %v714
        %v716 = vrcp.pop %v653
        %v717 = vmul.f32 1.0, %v716
        %v718 = vmul.f32 %v400, %v655
        %v719 = vmul.f32 %v403, %v657
        %v720 = vmul.f32 %v408, %v659
        %v721 = vmul.f32 %v411, %v661
        %v722 = vmul.f32 %v416, %v663
        %v723 = vmul.f32 %v419, %v665
        %v724 = vmul.f32 %v424, %v667
        %v725 = vmul.f32 %v427, %v669
        %v726 = vmul.f32 %v432, %v671
        %v727 = vmul.f32 %v435, %v673
        %v728 = vmul.f32 %v440, %v675
        %v729 = vmul.f32 %v443, %v677
        %v730 = vmul.f32 %v448, %v679
        %v731 = vmul.f32 %v451, %v681
        %v732 = vmul.f32 %v456, %v683
        %v733 = vmul.f32 %v459, %v685
        %v734 = vmul.f32 %v464, %v687
        %v735 = vmul.f32 %v467, %v689
        %v736 = vmul.f32 %v472, %v691
        %v737 = vmul.f32 %v475, %v693
        %v738 = vmul.f32 %v480, %v695
        %v739 = vmul.f32 %v483, %v697
        %v740 = vmul.f32 %v488, %v699
        %v741 = vmul.f32 %v491, %v701
        %v742 = vmul.f32 %v496, %v703
        %v743 = vmul.f32 %v499, %v705
        %v744 = vmul.f32 %v504, %v707
        %v745 = vmul.f32 %v507, %v709
        %v746 = vmul.f32 %v512, %v711
        %v747 = vmul.f32 %v515, %v713
        %v748 = vmul.f32 %v520, %v715
        %v749 = vmul.f32 %v523, %v717
        %750 = vst [vmem:[%s164] sm:$0xff] %v718
        %751 = vst [vmem:[%s164 + $0x8] sm:$0xff] %v719
        %752 = vst [vmem:[%s164 + $0x10] sm:$0xff] %v720
        %753 = vst [vmem:[%s164 + $0x18] sm:$0xff] %v721
        %754 = vst [vmem:[%s164 + $0x20] sm:$0xff] %v722
        %755 = vst [vmem:[%s164 + $0x28] sm:$0xff] %v723
        %756 = vst [vmem:[%s164 + $0x30] sm:$0xff] %v724
        %757 = vst [vmem:[%s164 + $0x38] sm:$0xff] %v725
        %758 = vst [vmem:[%s164 + $0x40] sm:$0xff] %v726
        %759 = vst [vmem:[%s164 + $0x48] sm:$0xff] %v727
        %760 = vst [vmem:[%s164 + $0x50] sm:$0xff] %v728
        %761 = vst [vmem:[%s164 + $0x58] sm:$0xff] %v729
        %762 = vst [vmem:[%s164 + $0x60] sm:$0xff] %v730
        %763 = vst [vmem:[%s164 + $0x68] sm:$0xff] %v731
        %764 = vst [vmem:[%s164 + $0x70] sm:$0xff] %v732
        %765 = vst [vmem:[%s164 + $0x78] sm:$0xff] %v733
        %766 = vst [vmem:[%s164 + $0x80] sm:$0xff] %v734
        %767 = vst [vmem:[%s164 + $0x88] sm:$0xff] %v735
        %768 = vst [vmem:[%s164 + $0x90] sm:$0xff] %v736
        %769 = vst [vmem:[%s164 + $0x98] sm:$0xff] %v737
        %770 = vst [vmem:[%s164 + $0xa0] sm:$0xff] %v738
        %771 = vst [vmem:[%s164 + $0xa8] sm:$0xff] %v739
        %772 = vst [vmem:[%s164 + $0xb0] sm:$0xff] %v740
        %773 = vst [vmem:[%s164 + $0xb8] sm:$0xff] %v741
        %774 = vst [vmem:[%s164 + $0xc0] sm:$0xff] %v742
        %775 = vst [vmem:[%s164 + $0xc8] sm:$0xff] %v743
        %776 = vst [vmem:[%s164 + $0xd0] sm:$0xff] %v744
        %777 = vst [vmem:[%s164 + $0xd8] sm:$0xff] %v745
        %778 = vst [vmem:[%s164 + $0xe0] sm:$0xff] %v746
        %779 = vst [vmem:[%s164 + $0xe8] sm:$0xff] %v747
        %780 = vst [vmem:[%s164 + $0xf0] sm:$0xff] %v748
        %781 = vst [vmem:[%s164 + $0xf8] sm:$0xff] %v749
        %s782 = sand.u32 %s93, 1
        %s783 = scalar_lea.sflag [#allocation3], %s782
        %s784 = sand.u32 %s93, 1
        %s785 = smul.addr %s784, 256
        %s786 = scalar_lea.vmem [#allocation2], %s785
        // Predicated region
        $region33: #{tpu_custom_call.1} parent=31 // pred_check
          %p787 = pneg %p103
        $region34: #{tpu_custom_call.1} parent=31 // pred_check_branch
          %789 = sbr.rel (%p787) target = $region36
        $region35: #{tpu_custom_call.1} parent=31 // pred_region
          %s790 = smul.u32 32, %s17
          %s792 = ssub.s32 4096, 4096
          %793 = vsyncadd %s783, %s792
          %s794 = smul.addr %s790, 128
          %s795 = scalar_lea.hbm %s3, %s794
          %s796 = sshll.u32 %s786, 4
          %s797 = int_to_ptr.vmem [resolvable:$true] %s796
          %802 = dma.vmem_to_hbm [thread:$0]  %s797, 4096, %s795, %s783, 128, 128, 8
        $region36: #{tpu_custom_call.1} parent=31 // pred_fallthru
          _
      $region32: #{tpu_custom_call.1} parent=5 // pred_fallthru
        _
      %p803 = scmp.le.s32.totalorder 2, %s12
      // Predicated region
      $region37: #{tpu_custom_call.1} parent=5 // pred_check
        %p804 = pneg %p803
      $region38: #{tpu_custom_call.1} parent=5 // pred_check_branch
        %806 = sbr.rel (%p804) target = $region40
      $region39: #{tpu_custom_call.1} parent=5 // pred_region
        %s807 = ssub.s32 %s12, 2
        // Predicated region
        $region41: #{tpu_custom_call.1} parent=39 // pred_check
          %p808 = pneg %p109
        $region42: #{tpu_custom_call.1} parent=39 // pred_check_branch
          %810 = sbr.rel (%p808) target = $region44
        $region43: #{tpu_custom_call.1} parent=39 // pred_region
          %s811 = sand.u32 %s94, 1
          %s812 = scalar_lea.sflag [#allocation3], %s811
          %s813 = sand.u32 %s94, 1
          %s814 = smul.addr %s813, 256
          %s815 = scalar_lea.vmem [#allocation2], %s814
          %816 = dma.done %s812, 4096
        $region44: #{tpu_custom_call.1} parent=39 // pred_fallthru
          _
      $region40: #{tpu_custom_call.1} parent=5 // pred_fallthru
        _
    $region6: #{tpu_custom_call.1} parent=1 // loop_footer
      %s16 = sadd.s32 1, %s12
    $region7: #{tpu_custom_call.1} parent=1 // loop_footer_branch
      %11 = sbr.rel target = $region3
    $region8: #{tpu_custom_call.1} parent=1 // loop_exit
      _
    %817 = vsyncpa [#allocation3], 1
    %s818 = scalar_lea.sflag [#allocation3], 1
    %819 = vsyncpa %s818, 1

</llo_original>
